<compile_context>
chip_gen: v7x
topology: tpu7x:2x2x1
jax: 0.10.0
libtpu: 0.0.40
codegen_flags: <defaults>
</compile_context>

<pallas_src>
import functools

import jax
import jax.numpy as jnp
from jax.experimental import pallas as pl
from jax.experimental.pallas import tpu as pltpu


def cbow_kernel(x_ref, w1_ref, b1_ref, w2_ref, b2_ref, o_ref, *, window, vocab):
    # x_ref: (tb, W*V) bf16. Mean over the context window as a sum of W
    # lane-aligned slices with f32 accumulation (VPU only, no XLU reduce).
    xm = x_ref[:, 0:vocab].astype(jnp.float32)
    for w in range(1, window):
        xm = xm + x_ref[:, w * vocab:(w + 1) * vocab].astype(jnp.float32)
    xm = xm * (1.0 / window)                                     # (tb, V) f32

    # Linear(V -> H): bf16 MXU operands, f32 accumulate, f32 bias add.
    hm = jnp.dot(xm.astype(jnp.bfloat16), w1_ref[...],
                 preferred_element_type=jnp.float32) + b1_ref[...]      # (tb, H)

    # Linear(H -> V): bf16 MXU operands, f32 accumulate, f32 bias add.
    logits = jnp.dot(hm.astype(jnp.bfloat16), w2_ref[...],
                     preferred_element_type=jnp.float32) + b2_ref[...]  # (tb, V)

    # Numerically stable softmax over the vocab dim, exact normalization.
    m = jnp.max(logits, axis=-1, keepdims=True)
    e = jnp.exp(logits - m)
    denom = jnp.sum(e, axis=-1, keepdims=True)
    o_ref[...] = (e / denom).astype(o_ref.dtype)


def _pick_block_b(B, cap=256):
    """Largest divisor of B that is <= cap and leaves >= 2 grid steps (v7x)."""
    best = None
    for d in range(1, min(B, cap) + 1):
        if B % d == 0 and (B // d) >= 2:
            best = d
    if best is None:          # B == 1 or no divisor leaves 2 steps
        best = min(B, cap)
        while B % best != 0:
            best -= 1
    return best


def cbow_forward(x, w1, b1, w2, b2, *, block_b=None):
    """x: (B, W, V) float; w1: (V, H); b1: (1, H); w2: (H, V); b2: (1, V)."""
    B, W, V = x.shape
    _, H = w1.shape
    if block_b is None:
        block_b = _pick_block_b(B)
    assert B % block_b == 0, "batch must be divisible by the batch tile"
    grid = (B // block_b,)

    # Cast once in the wrapper: bf16 x (halves dominant HBM bytes), flattened
    # so the per-step block is (block_b, W*V) with no sublane padding; bf16
    # weights so the kernel does no per-step casts and VMEM residency halves.
    x_flat = x.astype(jnp.bfloat16).reshape(B, W * V)
    w1_bf = w1.astype(jnp.bfloat16)
    w2_bf = w2.astype(jnp.bfloat16)
    b1_f32 = b1.astype(jnp.float32)
    b2_f32 = b2.astype(jnp.float32)

    kernel = functools.partial(cbow_kernel, window=W, vocab=V)

    # TODO(synk): for very large vocab (V >= ~32k on v7x with its 64 MiB VMEM)
    # add a V-tile grid axis over w2/b2/out with an online softmax so w2 is
    # pipelined instead of fully VMEM-resident.
    return pl.pallas_call(
        kernel,
        out_shape=jax.ShapeDtypeStruct((B, V), jnp.float32),
        grid=grid,
        in_specs=[
            pl.BlockSpec((block_b, W * V), lambda i: (i, 0)),
            pl.BlockSpec((V, H), lambda i: (0, 0)),
            pl.BlockSpec((1, H), lambda i: (0, 0)),
            pl.BlockSpec((H, V), lambda i: (0, 0)),
            pl.BlockSpec((1, V), lambda i: (0, 0)),
        ],
        out_specs=pl.BlockSpec((block_b, V), lambda i: (i, 0)),
        compiler_params=pltpu.CompilerParams(
            dimension_semantics=("parallel",),
            vmem_limit_bytes=96 * 1024 * 1024),
    )(x_flat, w1_bf, b1_f32, w2_bf, b2_f32)


def _reference(x, w1, b1, w2, b2):
    # Faithful PyTorch-order reference in f32 (Linear -> mean -> Linear -> softmax).
    h = jnp.einsum("bwv,vh->bwh", x, w1) + b1
    hm = jnp.mean(h, axis=1)
    logits = hm @ w2 + b2
    return jax.nn.softmax(logits, axis=-1)


if __name__ == "__main__":
    # Small shapes consistent with the module: vocab (input_size)=256,
    # hidden=128, window=2 -> 2*window=4 context positions, batch=16
    # (two batch tiles of 8 so the parallel grid axis is exercised).
    B, W, V, H = 16, 4, 256, 128

    key = jax.random.PRNGKey(0)
    kx, kw1, kb1, kw2, kb2 = jax.random.split(key, 5)

    # Input: soft one-hot-ish context vectors (any float input works).
    x = jax.random.uniform(kx, (B, W, V), dtype=jnp.float32)

    # Deterministic parameter init mimicking nn.Linear (uniform +/- 1/sqrt(fan_in)).
    lim1 = 1.0 / (V ** 0.5)
    lim2 = 1.0 / (H ** 0.5)
    w1 = jax.random.uniform(kw1, (V, H), minval=-lim1, maxval=lim1, dtype=jnp.float32)
    b1 = jax.random.uniform(kb1, (1, H), minval=-lim1, maxval=lim1, dtype=jnp.float32)
    w2 = jax.random.uniform(kw2, (H, V), minval=-lim2, maxval=lim2, dtype=jnp.float32)
    b2 = jax.random.uniform(kb2, (1, V), minval=-lim2, maxval=lim2, dtype=jnp.float32)

    out = cbow_forward(x, w1, b1, w2, b2)
    out = jax.block_until_ready(out)

    ref = _reference(x, w1, b1, w2, b2)
    assert out.shape == (B, V)
    # Tolerances account for bf16 x / bf16 MXU operands (f32 accumulation kept).
    assert jnp.allclose(out, ref, atol=1e-3, rtol=2e-2), "mismatch vs JAX reference"
    # Exact-division softmax: rows sum to 1 to f32 precision.
    assert jnp.allclose(jnp.sum(out, axis=-1), 1.0, atol=1e-3), "softmax rows must sum to ~1"

    print("KERNEL_OK")
</pallas_src>

<mosaic_0001>
module attributes {stable_mosaic.version = 11 : i64} {
  func.func @cbow_kernel(%arg0: i32, %arg1: memref<8x1024xbf16, #tpu.memory_space<vmem>>, %arg2: memref<256x128xbf16, #tpu.memory_space<vmem>>, %arg3: memref<1x128xf32, #tpu.memory_space<vmem>>, %arg4: memref<128x256xbf16, #tpu.memory_space<vmem>>, %arg5: memref<1x256xf32, #tpu.memory_space<vmem>>, %arg6: memref<8x256xf32, #tpu.memory_space<vmem>>) attributes {dimension_semantics = [#tpu.dimension_semantics<parallel>], iteration_bounds = array<i64: 2>, scalar_prefetch = 0 : i64, scratch_operands = 0 : i64, tpu.core_type = #tpu.core_type<tc>, window_params = [{transform_indices = @transform_0, window_bounds = array<i64: 8, 1024>}, {pipeline_mode = #tpu.pipeline_mode<synchronous>, transform_indices = @transform_1, window_bounds = array<i64: 256, 128>}, {pipeline_mode = #tpu.pipeline_mode<synchronous>, transform_indices = @transform_2, window_bounds = array<i64: 1, 128>}, {pipeline_mode = #tpu.pipeline_mode<synchronous>, transform_indices = @transform_3, window_bounds = array<i64: 128, 256>}, {pipeline_mode = #tpu.pipeline_mode<synchronous>, transform_indices = @transform_4, window_bounds = array<i64: 1, 256>}, {transform_indices = @transform_5, window_bounds = array<i64: 8, 256>}]} {
    %c0 = arith.constant 0 : index
    %c0_0 = arith.constant 0 : index
    %0 = vector.load %arg1[%c0, %c0_0] : memref<8x1024xbf16, #tpu.memory_space<vmem>>, vector<8x256xbf16>
    %1 = arith.extf %0 : vector<8x256xbf16> to vector<8x256xf32>
    %c0_1 = arith.constant 0 : index
    %c256 = arith.constant 256 : index
    %2 = vector.load %arg1[%c0_1, %c256] : memref<8x1024xbf16, #tpu.memory_space<vmem>>, vector<8x256xbf16>
    %3 = arith.extf %2 : vector<8x256xbf16> to vector<8x256xf32>
    %4 = arith.addf %1, %3 : vector<8x256xf32>
    %c0_2 = arith.constant 0 : index
    %c512 = arith.constant 512 : index
    %5 = vector.load %arg1[%c0_2, %c512] : memref<8x1024xbf16, #tpu.memory_space<vmem>>, vector<8x256xbf16>
    %6 = arith.extf %5 : vector<8x256xbf16> to vector<8x256xf32>
    %7 = arith.addf %4, %6 : vector<8x256xf32>
    %c0_3 = arith.constant 0 : index
    %c768 = arith.constant 768 : index
    %8 = vector.load %arg1[%c0_3, %c768] : memref<8x1024xbf16, #tpu.memory_space<vmem>>, vector<8x256xbf16>
    %9 = arith.extf %8 : vector<8x256xbf16> to vector<8x256xf32>
    %10 = arith.addf %7, %9 : vector<8x256xf32>
    %cst = arith.constant 2.500000e-01 : f32
    %11 = vector.broadcast %cst : f32 to vector<8x256xf32>
    %12 = arith.mulf %10, %11 : vector<8x256xf32>
    %13 = arith.truncf %12 : vector<8x256xf32> to vector<8x256xbf16>
    %c0_4 = arith.constant 0 : index
    %c0_5 = arith.constant 0 : index
    %14 = vector.load %arg2[%c0_4, %c0_5] : memref<256x128xbf16, #tpu.memory_space<vmem>>, vector<256x128xbf16>
    %cst_6 = arith.constant dense<0.000000e+00> : vector<8x128xf32>
    %15 = tpu.matmul %13, %14, %cst_6 {dimension_numbers = #tpu.dot_dimension_numbers<[1], [0], [0], [1], [0, 0, 1, 1], [], []>} : vector<8x256xbf16>, vector<256x128xbf16>, vector<8x128xf32> -> vector<8x128xf32>
    %c0_7 = arith.constant 0 : index
    %c0_8 = arith.constant 0 : index
    %16 = vector.load %arg3[%c0_7, %c0_8] : memref<1x128xf32, #tpu.memory_space<vmem>>, vector<1x128xf32>
    %17 = vector.broadcast %16 : vector<1x128xf32> to vector<8x128xf32>
    %18 = arith.addf %15, %17 : vector<8x128xf32>
    %19 = arith.truncf %18 : vector<8x128xf32> to vector<8x128xbf16>
    %c0_9 = arith.constant 0 : index
    %c0_10 = arith.constant 0 : index
    %20 = vector.load %arg4[%c0_9, %c0_10] : memref<128x256xbf16, #tpu.memory_space<vmem>>, vector<128x256xbf16>
    %cst_11 = arith.constant dense<0.000000e+00> : vector<8x256xf32>
    %21 = tpu.matmul %19, %20, %cst_11 {dimension_numbers = #tpu.dot_dimension_numbers<[1], [0], [0], [1], [0, 0, 1, 1], [], []>} : vector<8x128xbf16>, vector<128x256xbf16>, vector<8x256xf32> -> vector<8x256xf32>
    %c0_12 = arith.constant 0 : index
    %c0_13 = arith.constant 0 : index
    %22 = vector.load %arg5[%c0_12, %c0_13] : memref<1x256xf32, #tpu.memory_space<vmem>>, vector<1x256xf32>
    %23 = vector.broadcast %22 : vector<1x256xf32> to vector<8x256xf32>
    %24 = arith.addf %21, %23 : vector<8x256xf32>
    %cst_14 = arith.constant dense<0xFF800000> : vector<8xf32>
    %25 = vector.multi_reduction <maximumf>, %24, %cst_14 [1] : vector<8x256xf32> to vector<8xf32>
    %26 = vector.shape_cast %25 : vector<8xf32> to vector<8x1xf32>
    %27 = vector.broadcast %26 : vector<8x1xf32> to vector<8x256xf32>
    %28 = arith.subf %24, %27 : vector<8x256xf32>
    %29 = math.exp %28 : vector<8x256xf32>
    %cst_15 = arith.constant dense<0.000000e+00> : vector<8xf32>
    %30 = vector.multi_reduction <add>, %29, %cst_15 [1] : vector<8x256xf32> to vector<8xf32>
    %31 = vector.shape_cast %30 : vector<8xf32> to vector<8x1xf32>
    %32 = vector.broadcast %31 : vector<8x1xf32> to vector<8x256xf32>
    %33 = arith.divf %29, %32 : vector<8x256xf32>
    %c0_16 = arith.constant 0 : index
    %c0_17 = arith.constant 0 : index
    %34 = vector.load %arg6[%c0_16, %c0_17] : memref<8x256xf32, #tpu.memory_space<vmem>>, vector<8x256xf32>
    tpu.vector_store %arg6[%c0_16, %c0_17], %33 {strides = array<i32>} : memref<8x256xf32, #tpu.memory_space<vmem>>, vector<8x256xf32>,
    return
  }
  func.func @transform_0(%arg0: i32) -> (i32, i32) {
    %c0_i32 = arith.constant 0 : i32
    %c0_i32_0 = arith.constant 0 : i32
    return %arg0, %c0_i32 : i32, i32
  }
  func.func @transform_1(%arg0: i32) -> (i32, i32) {
    %c0_i32 = arith.constant 0 : i32
    %c0_i32_0 = arith.constant 0 : i32
    %c0_i32_1 = arith.constant 0 : i32
    return %c0_i32, %c0_i32_0 : i32, i32
  }
  func.func @transform_2(%arg0: i32) -> (i32, i32) {
    %c0_i32 = arith.constant 0 : i32
    %c0_i32_0 = arith.constant 0 : i32
    %c0_i32_1 = arith.constant 0 : i32
    return %c0_i32, %c0_i32_0 : i32, i32
  }
  func.func @transform_3(%arg0: i32) -> (i32, i32) {
    %c0_i32 = arith.constant 0 : i32
    %c0_i32_0 = arith.constant 0 : i32
    %c0_i32_1 = arith.constant 0 : i32
    return %c0_i32, %c0_i32_0 : i32, i32
  }
  func.func @transform_4(%arg0: i32) -> (i32, i32) {
    %c0_i32 = arith.constant 0 : i32
    %c0_i32_0 = arith.constant 0 : i32
    %c0_i32_1 = arith.constant 0 : i32
    return %c0_i32, %c0_i32_0 : i32, i32
  }
  func.func @transform_5(%arg0: i32) -> (i32, i32) {
    %c0_i32 = arith.constant 0 : i32
    %c0_i32_0 = arith.constant 0 : i32
    return %arg0, %c0_i32 : i32, i32
  }
}

</mosaic_0001>

<llo_original>
// kernel: tpu_custom_call.1
$region0: #{tpu_custom_call.1}
  #allocation0 [shape = 'u32[]', space=smem, size = 0x4, offset = 0x4, fixed_abs, tag = 'smem constant byte address 0x4 - core index']
  #allocation1 [shape = 'u32[144,128]{1,0:T(1,128)}', space=vmem, size = 0x12000, scoped, tag = 'internal scratch']
  %s0 = inlined_call_operand.hbm [shape: bf16[16,1024], index: 0, kind: input, shape index: {}]
  %s1 = inlined_call_operand.hbm [shape: bf16[256,128], index: 1, kind: input, shape index: {}]
  %s2 = inlined_call_operand.hbm [shape: f32[1,128], index: 2, kind: input, shape index: {}]
  %s3 = inlined_call_operand.hbm [shape: bf16[128,256], index: 3, kind: input, shape index: {}]
  %s4 = inlined_call_operand.hbm [shape: f32[1,256], index: 4, kind: input, shape index: {}]
  %s5 = inlined_call_operand.hbm [shape: f32[16,256], index: 5, kind: output, shape index: {}]
  %s6 = sld [smem:[#allocation0]]
  $region73: #{tpu_custom_call.1} parent=0
    _
  %s8 = ssub.s32 1, %s6
  %s9 = scalar_select 0, %s8, %s6
  $region1: #{tpu_custom_call.1} parent=0
    #allocation2 [shape = 'u8[32768]{0}', space=vmem, size = 0x8000, scoped, tag = 'input window, operand 0']
    #allocation3 [shape = 's32[2]{0}', space=sflag, size = 0x8, scoped, tag = 'scoped memory for tpu_custom_call.1']
    #allocation4 [shape = 's32[2]{0}', space=sflag, size = 0x8, scoped, tag = 'scoped memory for tpu_custom_call.1']
    #allocation5 [shape = 'u8[65536]{0}', space=vmem, size = 0x10000, scoped, tag = 'input window, operand 1, single buffered']
    #allocation6 [shape = 's32[1]{0}', space=sflag, size = 0x4, scoped, tag = 'scoped memory for tpu_custom_call.1']
    #allocation7 [shape = 'u8[512]{0}', space=vmem, size = 0x400, scoped, tag = 'input window, operand 2, single buffered']
    #allocation8 [shape = 'u8[65536]{0}', space=vmem, size = 0x10000, scoped, tag = 'input window, operand 3, single buffered']
    #allocation9 [shape = 's32[1]{0}', space=sflag, size = 0x4, scoped, tag = 'scoped memory for tpu_custom_call.1']
    #allocation10 [shape = 'u8[1024]{0}', space=vmem, size = 0x400, scoped, tag = 'input window, operand 4, single buffered']
    #allocation11 [shape = 'u8[16384]{0}', space=vmem, size = 0x4000, scoped, tag = 'output window, operand 0']
    %10 = vsyncpa [#allocation3], 0
    %s11 = scalar_lea.sflag [#allocation3], 1
    %12 = vsyncpa %s11, 0
    %13 = vsyncpa [#allocation6], 0
    %14 = vsyncpa [#allocation9], 0
    %15 = vsyncpa [#allocation4], 0
    %s16 = scalar_lea.sflag [#allocation4], 1
    %17 = vsyncpa %s16, 0
    loop: start=0, step=1, limit=4
    $region2: #{tpu_custom_call.1} parent=1 // loop_pre_header
      _
    $region3: #{tpu_custom_call.1} parent=1 // loop_header
      %s19 = sphi 0, %s23
      %p20 = scmp.ge.s32.totalorder %s19, 4
      %s29 = sphi 0, %s31
      %s32 = sphi 0, %s29
      %s33 = sphi 0, %s32
      %s49 = sphi 0, %s33
      %s53 = sphi 0, %s53
      %s55 = sphi 0, %s53
      %s56 = sphi 0, %s55
      %s70 = sphi 0, %s56
      %s74 = sphi 0, %s74
      %s76 = sphi 0, %s74
      %s77 = sphi 0, %s76
      %s91 = sphi 0, %s77
      %s95 = sphi 0, %s95
      %s97 = sphi 0, %s95
      %s98 = sphi 0, %s97
      %s112 = sphi 0, %s98
      %s116 = sphi 0, %s116
      %s118 = sphi 0, %s116
      %s119 = sphi 0, %s118
      %s133 = sphi 0, %s119
      %s139 = sphi 0, %s141
      %s142 = sphi 0, %s139
      %s143 = sphi 0, %s142
      %s159 = sphi 0, %s143
    $region4: #{tpu_custom_call.1} parent=1 // loop_header_branch
      %22 = sbr.rel (%p20) target = $region8
    $region5: #{tpu_custom_call.1} parent=1 // loop_body
      %s24 = ssub.s32 %s19, 1
      %s25 = ssub.s32 %s19, 2
      %s26 = sadd.s32 %s19, 1
      %s27 = ssub.s32 %s19, %s26
      %p28 = scmp.eq.s32.totalorder %s27, 0
      %s30 = sadd.s32 %s29, 1
      %s31 = scalar_select %p28, %s29, %s30
      %p34 = pneg %p28
      %p35 = scmp.eq.s32.totalorder %s19, 1
      %p36 = por %p34, %p35
      %p37 = scmp.ne.s32.totalorder %s29, %s32
      %p38 = scmp.eq.s32.totalorder %s19, 0
      %p39 = por %p37, %p38
      %p40 = scmp.ne.s32.totalorder %s29, %s32
      %p41 = scmp.eq.s32.totalorder %s24, 1
      %p42 = por %p40, %p41
      %p43 = scmp.ne.s32.totalorder %s32, %s33
      %p44 = scmp.eq.s32.totalorder %s24, 0
      %p45 = por %p43, %p44
      %p46 = scmp.ne.s32.totalorder %s32, %s33
      %p47 = scmp.eq.s32.totalorder %s25, 1
      %p48 = por %p46, %p47
      %p50 = scmp.ne.s32.totalorder %s33, %s49
      %p51 = scmp.eq.s32.totalorder %s25, 0
      %p52 = por %p50, %p51
      %s54 = sadd.s32 %s53, 1
      %p57 = scmp.eq.s32.totalorder %s19, 1
      %p58 = scmp.ne.s32.totalorder %s53, %s55
      %p59 = scmp.eq.s32.totalorder %s19, 0
      %p60 = por %p58, %p59
      %p61 = scmp.ne.s32.totalorder %s53, %s55
      %p62 = scmp.eq.s32.totalorder %s24, 1
      %p63 = por %p61, %p62
      %p64 = scmp.ne.s32.totalorder %s55, %s56
      %p65 = scmp.eq.s32.totalorder %s24, 0
      %p66 = por %p64, %p65
      %p67 = scmp.ne.s32.totalorder %s55, %s56
      %p68 = scmp.eq.s32.totalorder %s25, 1
      %p69 = por %p67, %p68
      %p71 = scmp.ne.s32.totalorder %s56, %s70
      %p72 = scmp.eq.s32.totalorder %s25, 0
      %p73 = por %p71, %p72
      %s75 = sadd.s32 %s74, 1
      %p78 = scmp.eq.s32.totalorder %s19, 1
      %p79 = scmp.ne.s32.totalorder %s74, %s76
      %p80 = scmp.eq.s32.totalorder %s19, 0
      %p81 = por %p79, %p80
      %p82 = scmp.ne.s32.totalorder %s74, %s76
      %p83 = scmp.eq.s32.totalorder %s24, 1
      %p84 = por %p82, %p83
      %p85 = scmp.ne.s32.totalorder %s76, %s77
      %p86 = scmp.eq.s32.totalorder %s24, 0
      %p87 = por %p85, %p86
      %p88 = scmp.ne.s32.totalorder %s76, %s77
      %p89 = scmp.eq.s32.totalorder %s25, 1
      %p90 = por %p88, %p89
      %p92 = scmp.ne.s32.totalorder %s77, %s91
      %p93 = scmp.eq.s32.totalorder %s25, 0
      %p94 = por %p92, %p93
      %s96 = sadd.s32 %s95, 1
      %p99 = scmp.eq.s32.totalorder %s19, 1
      %p100 = scmp.ne.s32.totalorder %s95, %s97
      %p101 = scmp.eq.s32.totalorder %s19, 0
      %p102 = por %p100, %p101
      %p103 = scmp.ne.s32.totalorder %s95, %s97
      %p104 = scmp.eq.s32.totalorder %s24, 1
      %p105 = por %p103, %p104
      %p106 = scmp.ne.s32.totalorder %s97, %s98
      %p107 = scmp.eq.s32.totalorder %s24, 0
      %p108 = por %p106, %p107
      %p109 = scmp.ne.s32.totalorder %s97, %s98
      %p110 = scmp.eq.s32.totalorder %s25, 1
      %p111 = por %p109, %p110
      %p113 = scmp.ne.s32.totalorder %s98, %s112
      %p114 = scmp.eq.s32.totalorder %s25, 0
      %p115 = por %p113, %p114
      %s117 = sadd.s32 %s116, 1
      %p120 = scmp.eq.s32.totalorder %s19, 1
      %p121 = scmp.ne.s32.totalorder %s116, %s118
      %p122 = scmp.eq.s32.totalorder %s19, 0
      %p123 = por %p121, %p122
      %p124 = scmp.ne.s32.totalorder %s116, %s118
      %p125 = scmp.eq.s32.totalorder %s24, 1
      %p126 = por %p124, %p125
      %p127 = scmp.ne.s32.totalorder %s118, %s119
      %p128 = scmp.eq.s32.totalorder %s24, 0
      %p129 = por %p127, %p128
      %p130 = scmp.ne.s32.totalorder %s118, %s119
      %p131 = scmp.eq.s32.totalorder %s25, 1
      %p132 = por %p130, %p131
      %p134 = scmp.ne.s32.totalorder %s119, %s133
      %p135 = scmp.eq.s32.totalorder %s25, 0
      %p136 = por %p134, %p135
      %s137 = ssub.s32 %s19, %s26
      %p138 = scmp.eq.s32.totalorder %s137, 0
      %s140 = sadd.s32 %s139, 1
      %s141 = scalar_select %p138, %s139, %s140
      %p144 = pneg %p138
      %p145 = scmp.eq.s32.totalorder %s19, 1
      %p146 = por %p144, %p145
      %p147 = scmp.ne.s32.totalorder %s139, %s142
      %p148 = scmp.eq.s32.totalorder %s19, 0
      %p149 = por %p147, %p148
      %p150 = scmp.ne.s32.totalorder %s139, %s142
      %p151 = scmp.eq.s32.totalorder %s24, 1
      %p152 = por %p150, %p151
      %p153 = scmp.ne.s32.totalorder %s142, %s143
      %p154 = scmp.eq.s32.totalorder %s24, 0
      %p155 = por %p153, %p154
      %p156 = scmp.ne.s32.totalorder %s142, %s143
      %p157 = scmp.eq.s32.totalorder %s25, 1
      %p158 = por %p156, %p157
      %p160 = scmp.ne.s32.totalorder %s143, %s159
      %p161 = scmp.eq.s32.totalorder %s25, 0
      %p162 = por %p160, %p161
      %p163 = scmp.le.s32.totalorder 1, %s19
      %p164 = scmp.lt.s32.totalorder %s19, 3
      %p165 = pnand %p163, %p164
      %p166 = pneg %p165
      // Predicated region
      $region9: #{tpu_custom_call.1} parent=5 // pred_check
        _
      $region10: #{tpu_custom_call.1} parent=5 // pred_check_branch
        %168 = sbr.rel (%p165) target = $region12
      $region11: #{tpu_custom_call.1} parent=5 // pred_region
        %s169 = ssub.s32 %s19, 1
        // Predicated region
        $region13: #{tpu_custom_call.1} parent=11 // pred_check
          %p170 = pneg %p66
        $region14: #{tpu_custom_call.1} parent=11 // pred_check_branch
          %172 = sbr.rel (%p170) target = $region16
        $region15: #{tpu_custom_call.1} parent=11 // pred_region
          %s174 = ssub.s32 2048, 2048
          %175 = vsyncadd [#allocation6], %s174
          %s176 = sshll.u32 [#allocation5], 4
          %s177 = int_to_ptr.vmem [resolvable:$true] %s176
          %182 = dma.hbm_to_vmem [thread:$0]  %s1, 2048, %s177, [#allocation6], 64, 64, 4
        $region16: #{tpu_custom_call.1} parent=11 // pred_fallthru
          _
        // Predicated region
        $region17: #{tpu_custom_call.1} parent=11 // pred_check
          %p183 = pneg %p87
        $region18: #{tpu_custom_call.1} parent=11 // pred_check_branch
          %185 = sbr.rel (%p183) target = $region20
        $region19: #{tpu_custom_call.1} parent=11 // pred_region
          %s187 = ssub.s32 16, 16
          %188 = vsyncadd [#allocation6], %s187
          %s190 = sshll.u32 [#allocation7], 4
          %s191 = int_to_ptr.vmem [resolvable:$true] %s190
          %193 = dma.hbm_to_vmem [thread:$0]  %s2, 16, %s191, [#allocation6]
        $region20: #{tpu_custom_call.1} parent=11 // pred_fallthru
          _
        // Predicated region
        $region21: #{tpu_custom_call.1} parent=11 // pred_check
          %p194 = pneg %p108
        $region22: #{tpu_custom_call.1} parent=11 // pred_check_branch
          %196 = sbr.rel (%p194) target = $region24
        $region23: #{tpu_custom_call.1} parent=11 // pred_region
          %s198 = ssub.s32 2048, 2048
          %199 = vsyncadd [#allocation9], %s198
          %s200 = sshll.u32 [#allocation8], 4
          %s201 = int_to_ptr.vmem [resolvable:$true] %s200
          %206 = dma.hbm_to_vmem [thread:$0]  %s3, 2048, %s201, [#allocation9], 128, 128, 8
        $region24: #{tpu_custom_call.1} parent=11 // pred_fallthru
          _
        // Predicated region
        $region25: #{tpu_custom_call.1} parent=11 // pred_check
          %p207 = pneg %p129
        $region26: #{tpu_custom_call.1} parent=11 // pred_check_branch
          %209 = sbr.rel (%p207) target = $region28
        $region27: #{tpu_custom_call.1} parent=11 // pred_region
          %s211 = ssub.s32 32, 32
          %212 = vsyncadd [#allocation9], %s211
          %s214 = sshll.u32 [#allocation10], 4
          %s215 = int_to_ptr.vmem [resolvable:$true] %s214
          %217 = dma.hbm_to_vmem [thread:$0]  %s4, 32, %s215, [#allocation9]
        $region28: #{tpu_custom_call.1} parent=11 // pred_fallthru
          _
      $region12: #{tpu_custom_call.1} parent=5 // pred_fallthru
        _
      %p218 = scmp.lt.s32.totalorder %s19, 2
      // Predicated region
      $region29: #{tpu_custom_call.1} parent=5 // pred_check
        %p219 = pneg %p218
      $region30: #{tpu_custom_call.1} parent=5 // pred_check_branch
        %221 = sbr.rel (%p219) target = $region32
      $region31: #{tpu_custom_call.1} parent=5 // pred_region
        // Predicated region
        $region33: #{tpu_custom_call.1} parent=31 // pred_check
          %p222 = pneg %p39
        $region34: #{tpu_custom_call.1} parent=31 // pred_check_branch
          %224 = sbr.rel (%p222) target = $region36
        $region35: #{tpu_custom_call.1} parent=31 // pred_region
          %s225 = sand.u32 %s29, 1
          %s226 = scalar_lea.sflag [#allocation3], %s225
          %s227 = sand.u32 %s29, 1
          %s228 = smul.addr %s227, 32
          %s229 = scalar_lea.vmem [#allocation2], %s228
          %s231 = ssub.s32 512, 512
          %232 = vsyncadd %s226, %s231
          %s233 = smul.addr %s19, 8
          %s234 = smul.addr %s233, 64
          %s235 = scalar_lea.hbm %s0, %s234
          %s237 = sshll.u32 %s229, 4
          %s238 = int_to_ptr.vmem [resolvable:$true] %s237
          %240 = dma.hbm_to_vmem [thread:$0]  %s235, 512, %s238, %s226
        $region36: #{tpu_custom_call.1} parent=31 // pred_fallthru
          _
      $region32: #{tpu_custom_call.1} parent=5 // pred_fallthru
        _
      %p241 = scmp.le.s32.totalorder 1, %s19
      %p242 = scmp.lt.s32.totalorder %s19, 3
      %p243 = pnand %p241, %p242
      %p244 = pneg %p243
      // Predicated region
      $region37: #{tpu_custom_call.1} parent=5 // pred_check
        _
      $region38: #{tpu_custom_call.1} parent=5 // pred_check_branch
        %246 = sbr.rel (%p243) target = $region40
      $region39: #{tpu_custom_call.1} parent=5 // pred_region
        %s247 = ssub.s32 %s19, 1
        %s248 = sand.u32 %s32, 1
        %s249 = scalar_lea.sflag [#allocation3], %s248
        %s250 = sand.u32 %s32, 1
        %s251 = smul.addr %s250, 32
        %s252 = scalar_lea.vmem [#allocation2], %s251
        // Predicated region
        $region41: #{tpu_custom_call.1} parent=39 // pred_check
          %p253 = pneg %p45
        $region42: #{tpu_custom_call.1} parent=39 // pred_check_branch
          %255 = sbr.rel (%p253) target = $region44
        $region43: #{tpu_custom_call.1} parent=39 // pred_region
          %256 = dma.done %s249, 512
        $region44: #{tpu_custom_call.1} parent=39 // pred_fallthru
          _
        // Predicated region
        $region45: #{tpu_custom_call.1} parent=39 // pred_check
          %p257 = pneg %p66
        $region46: #{tpu_custom_call.1} parent=39 // pred_check_branch
          %259 = sbr.rel (%p257) target = $region48
        $region47: #{tpu_custom_call.1} parent=39 // pred_region
          %260 = dma.done [#allocation6], 2048
        $region48: #{tpu_custom_call.1} parent=39 // pred_fallthru
          _
        // Predicated region
        $region49: #{tpu_custom_call.1} parent=39 // pred_check
          %p261 = pneg %p87
        $region50: #{tpu_custom_call.1} parent=39 // pred_check_branch
          %263 = sbr.rel (%p261) target = $region52
        $region51: #{tpu_custom_call.1} parent=39 // pred_region
          %264 = dma.done [#allocation6], 16
        $region52: #{tpu_custom_call.1} parent=39 // pred_fallthru
          _
        // Predicated region
        $region53: #{tpu_custom_call.1} parent=39 // pred_check
          %p265 = pneg %p108
        $region54: #{tpu_custom_call.1} parent=39 // pred_check_branch
          %267 = sbr.rel (%p265) target = $region56
        $region55: #{tpu_custom_call.1} parent=39 // pred_region
          %268 = dma.done [#allocation9], 2048
        $region56: #{tpu_custom_call.1} parent=39 // pred_fallthru
          _
        // Predicated region
        $region57: #{tpu_custom_call.1} parent=39 // pred_check
          %p269 = pneg %p129
        $region58: #{tpu_custom_call.1} parent=39 // pred_check_branch
          %271 = sbr.rel (%p269) target = $region60
        $region59: #{tpu_custom_call.1} parent=39 // pred_region
          %272 = dma.done [#allocation9], 32
        $region60: #{tpu_custom_call.1} parent=39 // pred_fallthru
          _
        %s273 = sand.u32 %s32, 1
        %s274 = scalar_lea.sflag [#allocation3], %s273
        %s275 = sand.u32 %s32, 1
        %s276 = smul.addr %s275, 32
        %s277 = scalar_lea.vmem [#allocation2], %s276
        %p278 = pneg %p45
        %p279 = pneg %p42
        %p280 = pneg %p66
        %p281 = pneg %p63
        %p282 = pneg %p87
        %p283 = pneg %p84
        %p284 = pneg %p108
        %p285 = pneg %p105
        %p286 = pneg %p129
        %p287 = pneg %p126
        %p288 = pneg %p155
        %p289 = pneg %p152
        %s290 = sand.u32 %s142, 1
        %s291 = scalar_lea.sflag [#allocation4], %s290
        %s292 = sand.u32 %s142, 1
        %s293 = smul.addr %s292, 16
        %s294 = scalar_lea.vmem [#allocation11], %s293
        %v296 = vld [vmem:[%s252] sm:$0xff]
        %v297 = vunpack.c.l.bf16 %v296
        %v298 = vunpack.c.h.bf16 %v296
        %v299 = vld [vmem:[%s252 + $0x8] sm:$0xff]
        %v300 = vunpack.c.l.bf16 %v299
        %v301 = vunpack.c.h.bf16 %v299
        %v302 = vadd.f32 %v297, %v300
        %v303 = vadd.f32 %v298, %v301
        %v304 = vld [vmem:[%s252 + $0x10] sm:$0xff]
        %v305 = vunpack.c.l.bf16 %v304
        %v306 = vunpack.c.h.bf16 %v304
        %v307 = vadd.f32 %v302, %v305
        %v308 = vadd.f32 %v303, %v306
        %v309 = vld [vmem:[%s252 + $0x18] sm:$0xff]
        %v310 = vunpack.c.l.bf16 %v309
        %v311 = vunpack.c.h.bf16 %v309
        %v312 = vadd.f32 %v307, %v310
        %v313 = vadd.f32 %v308, %v311
        %v314 = vmul.f32 %v312, 0.25
        %v315 = vmul.f32 %v313, 0.25
        %v316 = vpack.c.bf16 %v314, %v314
        %v317 = vpack.c.bf16 %v315, %v315
        %v318 = vld [vmem:[#allocation5] sm:$0xf]
        %v319 = vld [vmem:[#allocation5 + $0x4] sm:$0xf]
        %v320 = vld [vmem:[#allocation5 + $0x8] sm:$0xf]
        %v321 = vld [vmem:[#allocation5 + $0xc] sm:$0xf]
        %v322 = vld [vmem:[#allocation5 + $0x10] sm:$0xf]
        %v323 = vld [vmem:[#allocation5 + $0x14] sm:$0xf]
        %v324 = vld [vmem:[#allocation5 + $0x18] sm:$0xf]
        %v325 = vld [vmem:[#allocation5 + $0x1c] sm:$0xf]
        %v326 = vld [vmem:[#allocation5 + $0x20] sm:$0xf]
        %v327 = vld [vmem:[#allocation5 + $0x24] sm:$0xf]
        %v328 = vld [vmem:[#allocation5 + $0x28] sm:$0xf]
        %v329 = vld [vmem:[#allocation5 + $0x2c] sm:$0xf]
        %v330 = vld [vmem:[#allocation5 + $0x30] sm:$0xf]
        %v331 = vld [vmem:[#allocation5 + $0x34] sm:$0xf]
        %v332 = vld [vmem:[#allocation5 + $0x38] sm:$0xf]
        %v333 = vld [vmem:[#allocation5 + $0x3c] sm:$0xf]
        %v334 = vld [vmem:[#allocation5 + $0x40] sm:$0xf]
        %v335 = vld [vmem:[#allocation5 + $0x44] sm:$0xf]
        %v336 = vld [vmem:[#allocation5 + $0x48] sm:$0xf]
        %v337 = vld [vmem:[#allocation5 + $0x4c] sm:$0xf]
        %v338 = vld [vmem:[#allocation5 + $0x50] sm:$0xf]
        %v339 = vld [vmem:[#allocation5 + $0x54] sm:$0xf]
        %v340 = vld [vmem:[#allocation5 + $0x58] sm:$0xf]
        %v341 = vld [vmem:[#allocation5 + $0x5c] sm:$0xf]
        %v342 = vld [vmem:[#allocation5 + $0x60] sm:$0xf]
        %v343 = vld [vmem:[#allocation5 + $0x64] sm:$0xf]
        %v344 = vld [vmem:[#allocation5 + $0x68] sm:$0xf]
        %v345 = vld [vmem:[#allocation5 + $0x6c] sm:$0xf]
        %v346 = vld [vmem:[#allocation5 + $0x70] sm:$0xf]
        %v347 = vld [vmem:[#allocation5 + $0x74] sm:$0xf]
        %v348 = vld [vmem:[#allocation5 + $0x78] sm:$0xf]
        %v349 = vld [vmem:[#allocation5 + $0x7c] sm:$0xf]
        %v350 = vld [vmem:[#allocation7] sm:$0x1]
        %v352 = vlaneseq
        %v353 = vshrl.u32 %v352, 7
        %v354 = vsub.s32 0, %v353
        %v355 = vrot.slane %v350, %v354
        %v389 = vunpack.c.l.b16 %v318
        %v390 = vunpack.c.l.b16 %v319
        %v391 = vunpack.c.l.b16 %v320
        %v392 = vunpack.c.l.b16 %v321
        %v393 = vunpack.c.l.b16 %v322
        %v394 = vunpack.c.l.b16 %v323
        %v395 = vunpack.c.l.b16 %v324
        %v396 = vunpack.c.l.b16 %v325
        %v397 = vunpack.c.l.b16 %v326
        %v398 = vunpack.c.l.b16 %v327
        %v399 = vunpack.c.l.b16 %v328
        %v400 = vunpack.c.l.b16 %v329
        %v401 = vunpack.c.l.b16 %v330
        %v402 = vunpack.c.l.b16 %v331
        %v403 = vunpack.c.l.b16 %v332
        %v404 = vunpack.c.l.b16 %v333
        %v405 = vunpack.c.l.b16 %v334
        %v406 = vunpack.c.l.b16 %v335
        %v407 = vunpack.c.l.b16 %v336
        %v408 = vunpack.c.l.b16 %v337
        %v409 = vunpack.c.l.b16 %v338
        %v410 = vunpack.c.l.b16 %v339
        %v411 = vunpack.c.l.b16 %v340
        %v412 = vunpack.c.l.b16 %v341
        %v413 = vunpack.c.l.b16 %v342
        %v414 = vunpack.c.l.b16 %v343
        %v415 = vunpack.c.l.b16 %v344
        %v416 = vunpack.c.l.b16 %v345
        %v417 = vunpack.c.l.b16 %v346
        %v418 = vunpack.c.l.b16 %v347
        %v419 = vunpack.c.l.b16 %v348
        %v420 = vunpack.c.l.b16 %v349
        %v421 = vpack.c.b16 %v390, %v389
        %v422 = vpack.c.b16 %v392, %v391
        %v423 = vpack.c.b16 %v394, %v393
        %v424 = vpack.c.b16 %v396, %v395
        %v425 = vpack.c.b16 %v398, %v397
        %v426 = vpack.c.b16 %v400, %v399
        %v427 = vpack.c.b16 %v402, %v401
        %v428 = vpack.c.b16 %v404, %v403
        %v429 = vpack.c.b16 %v406, %v405
        %v430 = vpack.c.b16 %v408, %v407
        %v431 = vpack.c.b16 %v410, %v409
        %v432 = vpack.c.b16 %v412, %v411
        %v433 = vpack.c.b16 %v414, %v413
        %v434 = vpack.c.b16 %v416, %v415
        %v435 = vpack.c.b16 %v418, %v417
        %v436 = vpack.c.b16 %v420, %v419
        %453 = vmatprep.subr.bf16.mxu0 0
        %454 = vmatpush1.bf16.msra.mxu0 %v421
        %455 = vmatprep.subr.bf16.mxu0 0
        %456 = vmatpush1.bf16.msra.mxu0 %v422
        %457 = vmatprep.subr.bf16.mxu0 0
        %458 = vmatpush1.bf16.msra.mxu0 %v423
        %459 = vmatprep.subr.bf16.mxu0 0
        %460 = vmatpush1.bf16.msra.mxu0 %v424
        %461 = vmatprep.subr.bf16.mxu0 0
        %462 = vmatpush1.bf16.msra.mxu0 %v425
        %463 = vmatprep.subr.bf16.mxu0 0
        %464 = vmatpush1.bf16.msra.mxu0 %v426
        %465 = vmatprep.subr.bf16.mxu0 0
        %466 = vmatpush1.bf16.msra.mxu0 %v427
        %467 = vmatprep.subr.bf16.mxu0 0
        %468 = vmatpush1.bf16.msra.mxu0 %v428
        %469 = vmatprep.subr.bf16.mxu0 0
        %470 = vmatpush1.bf16.msra.mxu0 %v429
        %471 = vmatprep.subr.bf16.mxu0 0
        %472 = vmatpush1.bf16.msra.mxu0 %v430
        %473 = vmatprep.subr.bf16.mxu0 0
        %474 = vmatpush1.bf16.msra.mxu0 %v431
        %475 = vmatprep.subr.bf16.mxu0 0
        %476 = vmatpush1.bf16.msra.mxu0 %v432
        %477 = vmatprep.subr.bf16.mxu0 0
        %478 = vmatpush1.bf16.msra.mxu0 %v433
        %479 = vmatprep.subr.bf16.mxu0 0
        %480 = vmatpush1.bf16.msra.mxu0 %v434
        %481 = vmatprep.subr.bf16.mxu0 0
        %482 = vmatpush1.bf16.msra.mxu0 %v435
        %483 = vmatprep.subr.bf16.mxu0 0
        %484 = vmatpush1.bf16.msra.mxu0 %v436
        %485 = vmatprep.mubr.bf16.mxu0 %v317
        %486 = vmatmul.mubr.bf16.gmra.mrb[0].mxu0 %v316
        %v487 = vpop.f32.mrb[0].mxu0
        %v488 = vadd.f32 %v355, %v487
        %v489 = vpop.f32.mrb[0].mxu0
        %v490 = vpop.f32.mrb[0].mxu0
        %v491 = vpop.f32.mrb[0].mxu0
        %492 = vdwg.mxu0
        %v493 = vpack.c.bf16 %v488, %v488
        %v494 = vld [vmem:[#allocation8] sm:$0xff]
        %v495 = vld [vmem:[#allocation8 + $0x8] sm:$0xff]
        %v496 = vld [vmem:[#allocation8 + $0x10] sm:$0xff]
        %v497 = vld [vmem:[#allocation8 + $0x18] sm:$0xff]
        %v498 = vld [vmem:[#allocation8 + $0x20] sm:$0xff]
        %v499 = vld [vmem:[#allocation8 + $0x28] sm:$0xff]
        %v500 = vld [vmem:[#allocation8 + $0x30] sm:$0xff]
        %v501 = vld [vmem:[#allocation8 + $0x38] sm:$0xff]
        %v502 = vld [vmem:[#allocation8 + $0x40] sm:$0xff]
        %v503 = vld [vmem:[#allocation8 + $0x48] sm:$0xff]
        %v504 = vld [vmem:[#allocation8 + $0x50] sm:$0xff]
        %v505 = vld [vmem:[#allocation8 + $0x58] sm:$0xff]
        %v506 = vld [vmem:[#allocation8 + $0x60] sm:$0xff]
        %v507 = vld [vmem:[#allocation8 + $0x68] sm:$0xff]
        %v508 = vld [vmem:[#allocation8 + $0x70] sm:$0xff]
        %v509 = vld [vmem:[#allocation8 + $0x78] sm:$0xff]
        %v510 = vld [vmem:[#allocation10] sm:$0x3]
        %v512 = vlaneseq
        %v513 = vshrl.u32 %v512, 7
        %v514 = vsub.s32 0, %v513
        %v515 = vrot.slane %v510, %v514
        %v516 = vlaneseq
        %v517 = vshrl.u32 %v516, 7
        %v518 = vsub.s32 1, %v517
        %v519 = vrot.slane %v510, %v518
        %v538 = vunpack.c.l.b16 %v494
        %v539 = vunpack.c.h.b16 %v494
        %v540 = vunpack.c.l.b16 %v495
        %v541 = vunpack.c.h.b16 %v495
        %v542 = vunpack.c.l.b16 %v496
        %v543 = vunpack.c.h.b16 %v496
        %v544 = vunpack.c.l.b16 %v497
        %v545 = vunpack.c.h.b16 %v497
        %v546 = vunpack.c.l.b16 %v498
        %v547 = vunpack.c.h.b16 %v498
        %v548 = vunpack.c.l.b16 %v499
        %v549 = vunpack.c.h.b16 %v499
        %v550 = vunpack.c.l.b16 %v500
        %v551 = vunpack.c.h.b16 %v500
        %v552 = vunpack.c.l.b16 %v501
        %v553 = vunpack.c.h.b16 %v501
        %v554 = vunpack.c.l.b16 %v502
        %v555 = vunpack.c.h.b16 %v502
        %v556 = vunpack.c.l.b16 %v503
        %v557 = vunpack.c.h.b16 %v503
        %v558 = vunpack.c.l.b16 %v504
        %v559 = vunpack.c.h.b16 %v504
        %v560 = vunpack.c.l.b16 %v505
        %v561 = vunpack.c.h.b16 %v505
        %v562 = vunpack.c.l.b16 %v506
        %v563 = vunpack.c.h.b16 %v506
        %v564 = vunpack.c.l.b16 %v507
        %v565 = vunpack.c.h.b16 %v507
        %v566 = vunpack.c.l.b16 %v508
        %v567 = vunpack.c.h.b16 %v508
        %v568 = vunpack.c.l.b16 %v509
        %v569 = vunpack.c.h.b16 %v509
        %v570 = vpack.c.b16 %v540, %v538
        %v571 = vpack.c.b16 %v541, %v539
        %v572 = vpack.c.b16 %v544, %v542
        %v573 = vpack.c.b16 %v545, %v543
        %v574 = vpack.c.b16 %v548, %v546
        %v575 = vpack.c.b16 %v549, %v547
        %v576 = vpack.c.b16 %v552, %v550
        %v577 = vpack.c.b16 %v553, %v551
        %v578 = vpack.c.b16 %v556, %v554
        %v579 = vpack.c.b16 %v557, %v555
        %v580 = vpack.c.b16 %v560, %v558
        %v581 = vpack.c.b16 %v561, %v559
        %v582 = vpack.c.b16 %v564, %v562
        %v583 = vpack.c.b16 %v565, %v563
        %v584 = vpack.c.b16 %v568, %v566
        %v585 = vpack.c.b16 %v569, %v567
        %602 = vmatprep.subr.bf16.mxu0 %v571
        %603 = vmatpush1.bf16.msra.mxu0 %v570
        %604 = vmatprep.subr.bf16.mxu0 %v573
        %605 = vmatpush1.bf16.msra.mxu0 %v572
        %606 = vmatprep.subr.bf16.mxu0 %v575
        %607 = vmatpush1.bf16.msra.mxu0 %v574
        %608 = vmatprep.subr.bf16.mxu0 %v577
        %609 = vmatpush1.bf16.msra.mxu0 %v576
        %610 = vmatprep.subr.bf16.mxu0 %v579
        %611 = vmatpush1.bf16.msra.mxu0 %v578
        %612 = vmatprep.subr.bf16.mxu0 %v581
        %613 = vmatpush1.bf16.msra.mxu0 %v580
        %614 = vmatprep.subr.bf16.mxu0 %v583
        %615 = vmatpush1.bf16.msra.mxu0 %v582
        %616 = vmatprep.subr.bf16.mxu0 %v585
        %617 = vmatpush1.bf16.msra.mxu0 %v584
        %618 = vmatprep.subr.bf16.mxu0 0
        %619 = vmatpush1.bf16.msra.mxu0 0
        %620 = vmatprep.subr.bf16.mxu0 0
        %621 = vmatpush1.bf16.msra.mxu0 0
        %622 = vmatprep.subr.bf16.mxu0 0
        %623 = vmatpush1.bf16.msra.mxu0 0
        %624 = vmatprep.subr.bf16.mxu0 0
        %625 = vmatpush1.bf16.msra.mxu0 0
        %626 = vmatprep.subr.bf16.mxu0 0
        %627 = vmatpush1.bf16.msra.mxu0 0
        %628 = vmatprep.subr.bf16.mxu0 0
        %629 = vmatpush1.bf16.msra.mxu0 0
        %630 = vmatprep.subr.bf16.mxu0 0
        %631 = vmatpush1.bf16.msra.mxu0 0
        %632 = vmatprep.subr.bf16.mxu0 0
        %633 = vmatpush1.bf16.msra.mxu0 0
        %634 = vmatprep.mubr.bf16.mxu0 0
        %635 = vmatmul.mubr.bf16.gmra.mrb[0].mxu0 %v493
        %v636 = vpop.f32.mrb[0].mxu0
        %v637 = vadd.f32 %v515, %v636
        %v638 = vpop.f32.mrb[0].mxu0
        %v639 = vadd.f32 %v519, %v638
        %v640 = vpop.f32.mrb[0].mxu0
        %v641 = vpop.f32.mrb[0].mxu0
        %642 = vdwg.mxu0
        %v643 = vmax.f32 %v637, %v639
        %644 = vmax.xlane.f32.xlu0 %v643
        %v645 = vpop.xlane.xlu0 %644
        %v646 = vsub.f32 %v637, %v645
        %v647 = vsub.f32 %v639, %v645
        %v648 = vmul.f32 %v646, 1.442695
        %v649 = vpow.pop %v648
        %v650 = vmul.f32 %v647, 1.442695
        %v651 = vpow.pop %v650
        %v652 = vadd.f32 %v649, %v651
        %653 = vadd.xlane.f32.xlu0 %v652
        %v654 = vpop.xlane.xlu0 %653
        %v655 = vrcp.pop %v654
        %v656 = vmul.f32 %v649, %v655
        %v657 = vmul.f32 %v651, %v655
        %658 = vst [vmem:[%s294] sm:$0xff] %v656
        %659 = vst [vmem:[%s294 + $0x8] sm:$0xff] %v657
        %s660 = sand.u32 %s142, 1
        %s661 = scalar_lea.sflag [#allocation4], %s660
        %s662 = sand.u32 %s142, 1
        %s663 = smul.addr %s662, 16
        %s664 = scalar_lea.vmem [#allocation11], %s663
        // Predicated region
        $region61: #{tpu_custom_call.1} parent=39 // pred_check
          %p665 = pneg %p152
        $region62: #{tpu_custom_call.1} parent=39 // pred_check_branch
          %667 = sbr.rel (%p665) target = $region64
        $region63: #{tpu_custom_call.1} parent=39 // pred_region
          %s669 = ssub.s32 256, 256
          %670 = vsyncadd %s661, %s669
          %s671 = smul.addr %s24, 2
          %s672 = smul.addr %s671, 128
          %s673 = scalar_lea.hbm %s5, %s672
          %s675 = sshll.u32 %s664, 4
          %s676 = int_to_ptr.vmem [resolvable:$true] %s675
          %678 = dma.vmem_to_hbm [thread:$0]  %s676, 256, %s673, %s661
        $region64: #{tpu_custom_call.1} parent=39 // pred_fallthru
          _
      $region40: #{tpu_custom_call.1} parent=5 // pred_fallthru
        _
      %p679 = scmp.le.s32.totalorder 2, %s19
      // Predicated region
      $region65: #{tpu_custom_call.1} parent=5 // pred_check
        %p680 = pneg %p679
      $region66: #{tpu_custom_call.1} parent=5 // pred_check_branch
        %682 = sbr.rel (%p680) target = $region68
      $region67: #{tpu_custom_call.1} parent=5 // pred_region
        %s683 = ssub.s32 %s19, 2
        // Predicated region
        $region69: #{tpu_custom_call.1} parent=67 // pred_check
          %p684 = pneg %p158
        $region70: #{tpu_custom_call.1} parent=67 // pred_check_branch
          %686 = sbr.rel (%p684) target = $region72
        $region71: #{tpu_custom_call.1} parent=67 // pred_region
          %s687 = sand.u32 %s143, 1
          %s688 = scalar_lea.sflag [#allocation4], %s687
          %s689 = sand.u32 %s143, 1
          %s690 = smul.addr %s689, 16
          %s691 = scalar_lea.vmem [#allocation11], %s690
          %692 = dma.done %s688, 256
        $region72: #{tpu_custom_call.1} parent=67 // pred_fallthru
          _
      $region68: #{tpu_custom_call.1} parent=5 // pred_fallthru
        _
    $region6: #{tpu_custom_call.1} parent=1 // loop_footer
      %s23 = sadd.s32 1, %s19
    $region7: #{tpu_custom_call.1} parent=1 // loop_footer_branch
      %18 = sbr.rel target = $region3
    $region8: #{tpu_custom_call.1} parent=1 // loop_exit
      _
    %693 = vsyncpa [#allocation3], 1
    %s694 = scalar_lea.sflag [#allocation3], 1
    %695 = vsyncpa %s694, 1
    %696 = vsyncpa [#allocation6], 1
    %697 = vsyncpa [#allocation9], 1
    %698 = vsyncpa [#allocation4], 1
    %s699 = scalar_lea.sflag [#allocation4], 1
    %700 = vsyncpa %s699, 1

</llo_original>
